<compile_context>
chip_gen: v7x
topology: tpu7x:2x2x1
jax: 0.10.0
libtpu: 0.0.40
codegen_flags: <defaults>
</compile_context>

<pallas_src>
import numpy as np
import jax
import jax.numpy as jnp
from jax.experimental import pallas as pl
from jax.experimental.pallas import tpu as pltpu


def _round_up(x, m):
    return ((x + m - 1) // m) * m


def partial_nll_kernel(exp_ref, r_ref, theta_ref, cens_ref, num_ref, acc_ref):
    k = pl.program_id(1)
    nk = pl.num_programs(1)

    # Zero the per-row-tile risk-set accumulator at the start of each K sweep.
    @pl.when(k == 0)
    def _():
        acc_ref[...] = jnp.zeros_like(acc_ref)

    # Risk-set partial sums for this (row tile, col tile), on the MXU:
    #   acc[j] += sum_i R[j, i] * exp(theta_i)
    # R streams from HBM as bf16 (exact for 0/1 indicators); the cast to f32 is
    # a cheap VPU op and the reduce runs on the otherwise-idle MXU, keeping the
    # VPU/XLU slots free so the kernel stays purely HBM-bound.
    r = r_ref[...].astype(jnp.float32)                            # (tm, tk)
    acc_ref[...] += jnp.dot(r, exp_ref[...],
                            preferred_element_type=jnp.float32)   # (tm, 1)

    # Epilogue for this row tile: emit the loss-numerator partial for this tile.
    @pl.when(k == nk - 1)
    def _():
        s = acc_ref[...]                                          # (tm, 1) risk sums
        obs = 1.0 - cens_ref[...]                                 # (tm, 1)
        # Padded rows have s == 0 and obs == 0; guard the log so they add 0.
        log_s = jnp.log(jnp.where(s > 0.0, s, 1.0))
        contrib = jnp.sum(obs * (theta_ref[...] - log_s))         # scalar
        num_ref[...] = jnp.broadcast_to(contrib.reshape(1, 1, 1), num_ref.shape)


def partial_nll(theta, R, censored, *, tm=512, tk=2048,
                r_compute_dtype=jnp.bfloat16):
    """Cox partial NLL. theta: (N,1) or (N,); R: (N,N); censored: (N,) or (N,1).

    r_compute_dtype=bf16 is exact for the canonical 0/1 risk-set indicator R;
    pass jnp.float32 if R is not binary.  For best performance pass R already
    in the compute dtype (ideally pre-padded) so the wrapper's pad/convert pass
    is a no-op — streaming the N x N matrix is the dominant cost of this loss.
    If all samples are censored (num_observed == 0) the result is NaN/inf,
    matching the PyTorch reference.
    """
    theta = jnp.asarray(theta, jnp.float32).reshape(-1)
    censored = jnp.asarray(censored, jnp.float32).reshape(-1)
    R = jnp.asarray(R)
    N = theta.shape[0]
    assert R.shape == (N, N)

    # Clamp tiles for small problems; keep the (8, 128) divisibility.
    tm = min(tm, _round_up(N, 8))
    tk = min(tk, _round_up(N, 128))
    assert tm % 8 == 0 and tk % 128 == 0

    np_r = _round_up(N, tm)
    np_c = _round_up(N, tk)
    pad_r, pad_c = np_r - N, np_c - N

    # exp(theta) hoisted out of the kernel (O(N)); streamed as a (tk, 1) column.
    exp_col = jnp.pad(jnp.exp(theta), (0, pad_c)).reshape(np_c, 1)
    theta_col = jnp.pad(theta, (0, pad_r)).reshape(np_r, 1)
    # Padded rows are marked censored so they contribute nothing.
    cens_col = jnp.pad(censored, (0, pad_r), constant_values=1.0).reshape(np_r, 1)

    # Only touch R when needed (avoid extra N^2 HBM passes if already prepared).
    if R.dtype != r_compute_dtype:
        R = R.astype(r_compute_dtype)
    if pad_r or pad_c:
        R = jnp.pad(R, ((0, pad_r), (0, pad_c)))

    grid = (np_r // tm, np_c // tk)

    num_parts = pl.pallas_call(
        partial_nll_kernel,
        out_shape=jax.ShapeDtypeStruct((grid[0], 8, 128), jnp.float32),
        grid_spec=pltpu.PrefetchScalarGridSpec(
            num_scalar_prefetch=0,
            grid=grid,
            in_specs=[
                pl.BlockSpec((tk, 1), lambda i, k: (k, 0)),    # exp(theta) column
                pl.BlockSpec((tm, tk), lambda i, k: (i, k)),   # R tile: dominant stream
                pl.BlockSpec((tm, 1), lambda i, k: (i, 0)),    # theta per row (epilogue)
                pl.BlockSpec((tm, 1), lambda i, k: (i, 0)),    # censored per row (epilogue)
            ],
            out_specs=pl.BlockSpec((1, 8, 128), lambda i, k: (i, 0, 0)),
            scratch_shapes=[
                pltpu.VMEM((tm, 1), jnp.float32),   # per-row-tile risk-set sums
            ],
        ),
        compiler_params=pltpu.CompilerParams(
            # Row tiles are independent -> shard across TensorCores on v7x;
            # the reduction (K) axis stays serial ("arbitrary").
            dimension_semantics=("parallel", "arbitrary"),
        ),
        cost_estimate=pl.CostEstimate(
            flops=2 * np_r * np_c,
            transcendentals=np_r,
            bytes_accessed=(np_r * np_c * R.dtype.itemsize
                            + (np_c + 2 * np_r) * 4
                            + grid[0] * 8 * 128 * 4),
        ),
    )(exp_col, R, theta_col, cens_col)

    # Tiny final reduce / divide in plain JAX (keeps the row-tile axis parallel).
    num_total = jnp.sum(num_parts[:, 0, 0])
    num_observed = jnp.sum(1.0 - censored)
    return -(num_total / num_observed)


def reference_partial_nll(theta, R, censored):
    # Literal JAX transcription of the PyTorch forward.
    theta = jnp.asarray(theta, jnp.float32)
    censored = jnp.asarray(censored, jnp.float32).reshape(-1)
    exp_theta = jnp.exp(theta)                               # (N, 1)
    observed = 1.0 - censored                                # (N,)
    num_observed = jnp.sum(observed)
    risk_sums = jnp.sum(exp_theta * R.T, axis=0)             # (N,) == R @ exp(theta)
    return -(jnp.sum((theta.reshape(-1) - jnp.log(risk_sums)) * observed)
             / num_observed)


if __name__ == "__main__":
    # Small shapes consistent with the module: theta (N,1), R (N,N), censored (N,).
    # N deliberately not a multiple of 128 to exercise the padding / clamping path.
    N = 200
    key = jax.random.PRNGKey(0)
    kt, ks, kc = jax.random.split(key, 3)

    theta = jax.random.normal(kt, (N, 1), dtype=jnp.float32)
    times = jax.random.uniform(ks, (N,), dtype=jnp.float32)
    # Canonical Cox risk-set indicator: R[j, i] = 1 iff t_i >= t_j (so R[j, j] = 1).
    R = (times[None, :] >= times[:, None]).astype(jnp.float32)
    censored = (jax.random.uniform(kc, (N,)) < 0.3).astype(jnp.float32)

    loss = partial_nll(theta, R, censored)
    loss = jax.block_until_ready(loss)

    ref = reference_partial_nll(theta, R, censored)
    np.testing.assert_allclose(np.asarray(loss), np.asarray(ref), rtol=5e-5, atol=5e-5)
    assert np.isfinite(np.asarray(loss))
    print("KERNEL_OK")
</pallas_src>

<mosaic_0001>
module attributes {stable_mosaic.version = 11 : i64} {
  func.func @partial_nll_kernel(%arg0: i32, %arg1: i32, %arg2: memref<256x1xf32, #tpu.memory_space<vmem>>, %arg3: memref<200x256xbf16, #tpu.memory_space<vmem>>, %arg4: memref<200x1xf32, #tpu.memory_space<vmem>>, %arg5: memref<200x1xf32, #tpu.memory_space<vmem>>, %arg6: memref<1x8x128xf32, #tpu.memory_space<vmem>>, %arg7: memref<200x1xf32, #tpu.memory_space<vmem>>) attributes {dimension_semantics = [#tpu.dimension_semantics<parallel>, #tpu.dimension_semantics<arbitrary>], iteration_bounds = array<i64: 1, 1>, scalar_prefetch = 0 : i64, scratch_operands = 1 : i64, tpu.core_type = #tpu.core_type<tc>, window_params = [{transform_indices = @transform_0, window_bounds = array<i64: 256, 1>}, {transform_indices = @transform_1, window_bounds = array<i64: 200, 256>}, {transform_indices = @transform_2, window_bounds = array<i64: 200, 1>}, {transform_indices = @transform_3, window_bounds = array<i64: 200, 1>}, {transform_indices = @transform_4, window_bounds = array<i64: 1, 8, 128>}]} {
    %c0_i32 = arith.constant 0 : i32
    %0 = arith.cmpi eq, %arg1, %c0_i32 : i32
    %1 = arith.extui %0 : i1 to i32
    %c0_i32_0 = arith.constant 0 : i32
    %2 = arith.cmpi ne, %1, %c0_i32_0 : i32
    scf.if %2 {
      %cst_10 = arith.constant 0.000000e+00 : f32
      %13 = vector.broadcast %cst_10 : f32 to vector<200x1xf32>
      %c0_11 = arith.constant 0 : index
      %c0_12 = arith.constant 0 : index
      %14 = vector.load %arg7[%c0_11, %c0_12] : memref<200x1xf32, #tpu.memory_space<vmem>>, vector<200x1xf32>
      tpu.vector_store %arg7[%c0_11, %c0_12], %13 {strides = array<i32>} : memref<200x1xf32, #tpu.memory_space<vmem>>, vector<200x1xf32>,
    } else {
    }
    %c0 = arith.constant 0 : index
    %c0_1 = arith.constant 0 : index
    %3 = vector.load %arg3[%c0, %c0_1] : memref<200x256xbf16, #tpu.memory_space<vmem>>, vector<200x256xbf16>
    %4 = arith.extf %3 : vector<200x256xbf16> to vector<200x256xf32>
    %c0_2 = arith.constant 0 : index
    %c0_3 = arith.constant 0 : index
    %5 = vector.load %arg7[%c0_2, %c0_3] : memref<200x1xf32, #tpu.memory_space<vmem>>, vector<200x1xf32>
    %c0_4 = arith.constant 0 : index
    %c0_5 = arith.constant 0 : index
    %6 = vector.load %arg2[%c0_4, %c0_5] : memref<256x1xf32, #tpu.memory_space<vmem>>, vector<256x1xf32>
    %cst = arith.constant dense<0.000000e+00> : vector<200x1xf32>
    %7 = tpu.matmul %4, %6, %cst {dimension_numbers = #tpu.dot_dimension_numbers<[1], [0], [0], [1], [0, 0, 1, 1], [], []>} : vector<200x256xf32>, vector<256x1xf32>, vector<200x1xf32> -> vector<200x1xf32>
    %8 = arith.addf %5, %7 : vector<200x1xf32>
    %c0_6 = arith.constant 0 : index
    %c0_7 = arith.constant 0 : index
    %9 = vector.load %arg7[%c0_6, %c0_7] : memref<200x1xf32, #tpu.memory_space<vmem>>, vector<200x1xf32>
    tpu.vector_store %arg7[%c0_6, %c0_7], %8 {strides = array<i32>} : memref<200x1xf32, #tpu.memory_space<vmem>>, vector<200x1xf32>,
    %c0_i32_8 = arith.constant 0 : i32
    %10 = arith.cmpi eq, %arg1, %c0_i32_8 : i32
    %11 = arith.extui %10 : i1 to i32
    %c0_i32_9 = arith.constant 0 : i32
    %12 = arith.cmpi ne, %11, %c0_i32_9 : i32
    scf.if %12 {
      %c0_10 = arith.constant 0 : index
      %c0_11 = arith.constant 0 : index
      %13 = vector.load %arg7[%c0_10, %c0_11] : memref<200x1xf32, #tpu.memory_space<vmem>>, vector<200x1xf32>
      %c0_12 = arith.constant 0 : index
      %c0_13 = arith.constant 0 : index
      %14 = vector.load %arg5[%c0_12, %c0_13] : memref<200x1xf32, #tpu.memory_space<vmem>>, vector<200x1xf32>
      %cst_14 = arith.constant 1.000000e+00 : f32
      %15 = vector.broadcast %cst_14 : f32 to vector<200x1xf32>
      %16 = arith.subf %15, %14 : vector<200x1xf32>
      %cst_15 = arith.constant 0.000000e+00 : f32
      %17 = vector.broadcast %cst_15 : f32 to vector<200x1xf32>
      %18 = arith.cmpf ogt, %13, %17 : vector<200x1xf32>
      %cst_16 = arith.constant 1.000000e+00 : f32
      %19 = vector.broadcast %cst_16 : f32 to vector<200x1xf32>
      %20 = arith.select %18, %13, %19 : vector<200x1xi1>, vector<200x1xf32>
      %21 = math.log %20 : vector<200x1xf32>
      %c0_17 = arith.constant 0 : index
      %c0_18 = arith.constant 0 : index
      %22 = vector.load %arg4[%c0_17, %c0_18] : memref<200x1xf32, #tpu.memory_space<vmem>>, vector<200x1xf32>
      %23 = arith.subf %22, %21 : vector<200x1xf32>
      %24 = arith.mulf %16, %23 : vector<200x1xf32>
      %25 = vector.shape_cast %24 : vector<200x1xf32> to vector<1x200x1xf32>
      %cst_19 = arith.constant dense<0.000000e+00> : vector<1xf32>
      %26 = vector.multi_reduction <add>, %25, %cst_19 [1, 2] : vector<1x200x1xf32> to vector<1xf32>
      %27 = vector.shape_cast %26 : vector<1xf32> to vector<1x1x1xf32>
      %28 = vector.extract %27[0, 0, 0] : f32 from vector<1x1x1xf32>
      %29 = vector.broadcast %28 : f32 to vector<1x1x1xf32>
      %30 = vector.shape_cast %29 : vector<1x1x1xf32> to vector<1x1x1xf32>
      %31 = vector.broadcast %30 : vector<1x1x1xf32> to vector<1x8x128xf32>
      %c0_20 = arith.constant 0 : index
      %c0_21 = arith.constant 0 : index
      %c0_22 = arith.constant 0 : index
      %32 = vector.load %arg6[%c0_20, %c0_21, %c0_22] : memref<1x8x128xf32, #tpu.memory_space<vmem>>, vector<1x8x128xf32>
      tpu.vector_store %arg6[%c0_20, %c0_21, %c0_22], %31 {strides = array<i32>} : memref<1x8x128xf32, #tpu.memory_space<vmem>>, vector<1x8x128xf32>,
    } else {
    }
    return
  }
  func.func @transform_0(%arg0: i32, %arg1: i32) -> (i32, i32) {
    %c0_i32 = arith.constant 0 : i32
    %c0_i32_0 = arith.constant 0 : i32
    return %arg1, %c0_i32 : i32, i32
  }
  func.func @transform_1(%arg0: i32, %arg1: i32) -> (i32, i32) {
    %c0_i32 = arith.constant 0 : i32
    return %arg0, %arg1 : i32, i32
  }
  func.func @transform_2(%arg0: i32, %arg1: i32) -> (i32, i32) {
    %c0_i32 = arith.constant 0 : i32
    %c0_i32_0 = arith.constant 0 : i32
    return %arg0, %c0_i32 : i32, i32
  }
  func.func @transform_3(%arg0: i32, %arg1: i32) -> (i32, i32) {
    %c0_i32 = arith.constant 0 : i32
    %c0_i32_0 = arith.constant 0 : i32
    return %arg0, %c0_i32 : i32, i32
  }
  func.func @transform_4(%arg0: i32, %arg1: i32) -> (i32, i32, i32) {
    %c0_i32 = arith.constant 0 : i32
    %c0_i32_0 = arith.constant 0 : i32
    %c0_i32_1 = arith.constant 0 : i32
    return %arg0, %c0_i32, %c0_i32_0 : i32, i32, i32
  }
}

</mosaic_0001>

<llo_original>
// kernel: tpu_custom_call.1
$region0: #{tpu_custom_call.1}
  #allocation0 [shape = 'u32[]', space=smem, size = 0x4, offset = 0x4, fixed_abs, tag = 'smem constant byte address 0x4 - core index']
  #allocation1 [shape = 'u32[144,128]{1,0:T(1,128)}', space=vmem, size = 0x12000, scoped, tag = 'internal scratch']
  #allocation2 [shape = 'f32[200,1]{1,0:T(8,128)}', space=vmem, size = 0x19000, scoped, tag = 'scratch operand']
  %s0 = inlined_call_operand.vmem [shape: f32[256,1], index: 0, kind: input, shape index: {}]
  %s1 = inlined_call_operand.vmem [shape: bf16[200,256], index: 1, kind: input, shape index: {}]
  %s2 = inlined_call_operand.vmem [shape: f32[200,1], index: 2, kind: input, shape index: {}]
  %s3 = inlined_call_operand.vmem [shape: f32[200,1], index: 3, kind: input, shape index: {}]
  %s4 = inlined_call_operand.hbm [shape: f32[1,8,128], index: 4, kind: output, shape index: {}]
  %s5 = sld [smem:[#allocation0]]
  $region34: #{tpu_custom_call.1} parent=0
    _
  %s7 = ssub.s32 1, %s5
  %s8 = scalar_select 0, %s7, %s5
  $region1: #{tpu_custom_call.1} parent=0
    #allocation3 [shape = 'u8[4096]{0}', space=vmem, size = 0x1000, scoped, tag = 'output window, operand 0, single buffered']
    #allocation4 [shape = 's32[1]{0}', space=sflag, size = 0x4, scoped, tag = 'scoped memory for tpu_custom_call.1']
    %9 = vsyncpa [#allocation4], 0
    // Predicated region
    $region2: #{tpu_custom_call.1} parent=1 // pred_check
      _
    $region3: #{tpu_custom_call.1} parent=1 // pred_check_branch
      %11 = sbr.rel (0) target = $region5
    $region4: #{tpu_custom_call.1} parent=1 // pred_region
      _
    $region5: #{tpu_custom_call.1} parent=1 // pred_fallthru
      _
    // Predicated region
    $region6: #{tpu_custom_call.1} parent=1 // pred_check
      _
    $region7: #{tpu_custom_call.1} parent=1 // pred_check_branch
      %13 = sbr.rel (0) target = $region9
    $region8: #{tpu_custom_call.1} parent=1 // pred_region
      _
    $region9: #{tpu_custom_call.1} parent=1 // pred_fallthru
      _
    // Predicated region
    $region10: #{tpu_custom_call.1} parent=1 // pred_check
      _
    $region11: #{tpu_custom_call.1} parent=1 // pred_check_branch
      %15 = sbr.rel (0) target = $region13
    $region12: #{tpu_custom_call.1} parent=1 // pred_region
      _
    $region13: #{tpu_custom_call.1} parent=1 // pred_fallthru
      _
    // Predicated region
    $region14: #{tpu_custom_call.1} parent=1 // pred_check
      _
    $region15: #{tpu_custom_call.1} parent=1 // pred_check_branch
      %17 = sbr.rel (0) target = $region17
    $region16: #{tpu_custom_call.1} parent=1 // pred_region
      _
    $region17: #{tpu_custom_call.1} parent=1 // pred_fallthru
      _
    %p18 = scmp.eq.s32.totalorder 0, 0
    // Predicated region
    $region18: #{tpu_custom_call.1} parent=1 // pred_check
      %p19 = pneg %p18
    $region19: #{tpu_custom_call.1} parent=1 // pred_check_branch
      %21 = sbr.rel (%p19) target = $region21
    $region20: #{tpu_custom_call.1} parent=1 // pred_region
      %vm22 = vcmask 7168
      %23 = vst.msk [vmem:[#allocation2] sm:$0xff] %vm22, 0.0
      %24 = vst.msk [vmem:[#allocation2 + $0x8] sm:$0xff] %vm22, 0.0
      %25 = vst.msk [vmem:[#allocation2 + $0x10] sm:$0xff] %vm22, 0.0
      %26 = vst.msk [vmem:[#allocation2 + $0x18] sm:$0xff] %vm22, 0.0
      %27 = vst.msk [vmem:[#allocation2 + $0x20] sm:$0xff] %vm22, 0.0
      %28 = vst.msk [vmem:[#allocation2 + $0x28] sm:$0xff] %vm22, 0.0
      %29 = vst.msk [vmem:[#allocation2 + $0x30] sm:$0xff] %vm22, 0.0
      %30 = vst.msk [vmem:[#allocation2 + $0x38] sm:$0xff] %vm22, 0.0
      %31 = vst.msk [vmem:[#allocation2 + $0x40] sm:$0xff] %vm22, 0.0
      %32 = vst.msk [vmem:[#allocation2 + $0x48] sm:$0xff] %vm22, 0.0
      %33 = vst.msk [vmem:[#allocation2 + $0x50] sm:$0xff] %vm22, 0.0
      %34 = vst.msk [vmem:[#allocation2 + $0x58] sm:$0xff] %vm22, 0.0
      %35 = vst.msk [vmem:[#allocation2 + $0x60] sm:$0xff] %vm22, 0.0
      %36 = vst.msk [vmem:[#allocation2 + $0x68] sm:$0xff] %vm22, 0.0
      %37 = vst.msk [vmem:[#allocation2 + $0x70] sm:$0xff] %vm22, 0.0
      %38 = vst.msk [vmem:[#allocation2 + $0x78] sm:$0xff] %vm22, 0.0
      %39 = vst.msk [vmem:[#allocation2 + $0x80] sm:$0xff] %vm22, 0.0
      %40 = vst.msk [vmem:[#allocation2 + $0x88] sm:$0xff] %vm22, 0.0
      %41 = vst.msk [vmem:[#allocation2 + $0x90] sm:$0xff] %vm22, 0.0
      %42 = vst.msk [vmem:[#allocation2 + $0x98] sm:$0xff] %vm22, 0.0
      %43 = vst.msk [vmem:[#allocation2 + $0xa0] sm:$0xff] %vm22, 0.0
      %44 = vst.msk [vmem:[#allocation2 + $0xa8] sm:$0xff] %vm22, 0.0
      %45 = vst.msk [vmem:[#allocation2 + $0xb0] sm:$0xff] %vm22, 0.0
      %46 = vst.msk [vmem:[#allocation2 + $0xb8] sm:$0xff] %vm22, 0.0
      %47 = vst.msk [vmem:[#allocation2 + $0xc0] sm:$0xff] %vm22, 0.0
    $region21: #{tpu_custom_call.1} parent=1 // pred_fallthru
      _
    %v48 = vld [vmem:[%s1] sm:$0xff]
    %v49 = vld [vmem:[%s1 + $0x8] sm:$0xff]
    %v50 = vld [vmem:[%s1 + $0x10] sm:$0xff]
    %v51 = vld [vmem:[%s1 + $0x18] sm:$0xff]
    %v52 = vld [vmem:[%s1 + $0x20] sm:$0xff]
    %v53 = vld [vmem:[%s1 + $0x28] sm:$0xff]
    %v54 = vld [vmem:[%s1 + $0x30] sm:$0xff]
    %v55 = vld [vmem:[%s1 + $0x38] sm:$0xff]
    %v56 = vld [vmem:[%s1 + $0x40] sm:$0xff]
    %v57 = vld [vmem:[%s1 + $0x48] sm:$0xff]
    %v58 = vld [vmem:[%s1 + $0x50] sm:$0xff]
    %v59 = vld [vmem:[%s1 + $0x58] sm:$0xff]
    %v60 = vld [vmem:[%s1 + $0x60] sm:$0xff]
    %v61 = vld [vmem:[%s1 + $0x68] sm:$0xff]
    %v62 = vld [vmem:[%s1 + $0x70] sm:$0xff]
    %v63 = vld [vmem:[%s1 + $0x78] sm:$0xff]
    %v64 = vld [vmem:[%s1 + $0x80] sm:$0xff]
    %v65 = vld [vmem:[%s1 + $0x88] sm:$0xff]
    %v66 = vld [vmem:[%s1 + $0x90] sm:$0xff]
    %v67 = vld [vmem:[%s1 + $0x98] sm:$0xff]
    %v68 = vld [vmem:[%s1 + $0xa0] sm:$0xff]
    %v69 = vld [vmem:[%s1 + $0xa8] sm:$0xff]
    %v70 = vld [vmem:[%s1 + $0xb0] sm:$0xff]
    %v71 = vld [vmem:[%s1 + $0xb8] sm:$0xff]
    %v72 = vld [vmem:[%s1 + $0xc0] sm:$0xff]
    %v73 = vunpack.c.l.bf16 %v48
    %v74 = vunpack.c.h.bf16 %v48
    %v75 = vunpack.c.l.bf16 %v49
    %v76 = vunpack.c.h.bf16 %v49
    %v77 = vunpack.c.l.bf16 %v50
    %v78 = vunpack.c.h.bf16 %v50
    %v79 = vunpack.c.l.bf16 %v51
    %v80 = vunpack.c.h.bf16 %v51
    %v81 = vunpack.c.l.bf16 %v52
    %v82 = vunpack.c.h.bf16 %v52
    %v83 = vunpack.c.l.bf16 %v53
    %v84 = vunpack.c.h.bf16 %v53
    %v85 = vunpack.c.l.bf16 %v54
    %v86 = vunpack.c.h.bf16 %v54
    %v87 = vunpack.c.l.bf16 %v55
    %v88 = vunpack.c.h.bf16 %v55
    %v89 = vunpack.c.l.bf16 %v56
    %v90 = vunpack.c.h.bf16 %v56
    %v91 = vunpack.c.l.bf16 %v57
    %v92 = vunpack.c.h.bf16 %v57
    %v93 = vunpack.c.l.bf16 %v58
    %v94 = vunpack.c.h.bf16 %v58
    %v95 = vunpack.c.l.bf16 %v59
    %v96 = vunpack.c.h.bf16 %v59
    %v97 = vunpack.c.l.bf16 %v60
    %v98 = vunpack.c.h.bf16 %v60
    %v99 = vunpack.c.l.bf16 %v61
    %v100 = vunpack.c.h.bf16 %v61
    %v101 = vunpack.c.l.bf16 %v62
    %v102 = vunpack.c.h.bf16 %v62
    %v103 = vunpack.c.l.bf16 %v63
    %v104 = vunpack.c.h.bf16 %v63
    %v105 = vunpack.c.l.bf16 %v64
    %v106 = vunpack.c.h.bf16 %v64
    %v107 = vunpack.c.l.bf16 %v65
    %v108 = vunpack.c.h.bf16 %v65
    %v109 = vunpack.c.l.bf16 %v66
    %v110 = vunpack.c.h.bf16 %v66
    %v111 = vunpack.c.l.bf16 %v67
    %v112 = vunpack.c.h.bf16 %v67
    %v113 = vunpack.c.l.bf16 %v68
    %v114 = vunpack.c.h.bf16 %v68
    %v115 = vunpack.c.l.bf16 %v69
    %v116 = vunpack.c.h.bf16 %v69
    %v117 = vunpack.c.l.bf16 %v70
    %v118 = vunpack.c.h.bf16 %v70
    %v119 = vunpack.c.l.bf16 %v71
    %v120 = vunpack.c.h.bf16 %v71
    %v121 = vunpack.c.l.bf16 %v72
    %v122 = vunpack.c.h.bf16 %v72
    %v123 = vld [vmem:[#allocation2] sm:$0xff]
    %v124 = vld [vmem:[#allocation2 + $0x8] sm:$0xff]
    %v125 = vld [vmem:[#allocation2 + $0x10] sm:$0xff]
    %v126 = vld [vmem:[#allocation2 + $0x18] sm:$0xff]
    %v127 = vld [vmem:[#allocation2 + $0x20] sm:$0xff]
    %v128 = vld [vmem:[#allocation2 + $0x28] sm:$0xff]
    %v129 = vld [vmem:[#allocation2 + $0x30] sm:$0xff]
    %v130 = vld [vmem:[#allocation2 + $0x38] sm:$0xff]
    %v131 = vld [vmem:[#allocation2 + $0x40] sm:$0xff]
    %v132 = vld [vmem:[#allocation2 + $0x48] sm:$0xff]
    %v133 = vld [vmem:[#allocation2 + $0x50] sm:$0xff]
    %v134 = vld [vmem:[#allocation2 + $0x58] sm:$0xff]
    %v135 = vld [vmem:[#allocation2 + $0x60] sm:$0xff]
    %v136 = vld [vmem:[#allocation2 + $0x68] sm:$0xff]
    %v137 = vld [vmem:[#allocation2 + $0x70] sm:$0xff]
    %v138 = vld [vmem:[#allocation2 + $0x78] sm:$0xff]
    %v139 = vld [vmem:[#allocation2 + $0x80] sm:$0xff]
    %v140 = vld [vmem:[#allocation2 + $0x88] sm:$0xff]
    %v141 = vld [vmem:[#allocation2 + $0x90] sm:$0xff]
    %v142 = vld [vmem:[#allocation2 + $0x98] sm:$0xff]
    %v143 = vld [vmem:[#allocation2 + $0xa0] sm:$0xff]
    %v144 = vld [vmem:[#allocation2 + $0xa8] sm:$0xff]
    %v145 = vld [vmem:[#allocation2 + $0xb0] sm:$0xff]
    %v146 = vld [vmem:[#allocation2 + $0xb8] sm:$0xff]
    %v147 = vld [vmem:[#allocation2 + $0xc0] sm:$0xff]
    %v148 = vld [vmem:[%s0] sm:$0xff]
    %v149 = vld [vmem:[%s0 + $0x8] sm:$0xff]
    %v150 = vld [vmem:[%s0 + $0x10] sm:$0xff]
    %v151 = vld [vmem:[%s0 + $0x18] sm:$0xff]
    %v152 = vld [vmem:[%s0 + $0x20] sm:$0xff]
    %v153 = vld [vmem:[%s0 + $0x28] sm:$0xff]
    %v154 = vld [vmem:[%s0 + $0x30] sm:$0xff]
    %v155 = vld [vmem:[%s0 + $0x38] sm:$0xff]
    %v156 = vld [vmem:[%s0 + $0x40] sm:$0xff]
    %v157 = vld [vmem:[%s0 + $0x48] sm:$0xff]
    %v158 = vld [vmem:[%s0 + $0x50] sm:$0xff]
    %v159 = vld [vmem:[%s0 + $0x58] sm:$0xff]
    %v160 = vld [vmem:[%s0 + $0x60] sm:$0xff]
    %v161 = vld [vmem:[%s0 + $0x68] sm:$0xff]
    %v162 = vld [vmem:[%s0 + $0x70] sm:$0xff]
    %v163 = vld [vmem:[%s0 + $0x78] sm:$0xff]
    %v164 = vld [vmem:[%s0 + $0x80] sm:$0xff]
    %v165 = vld [vmem:[%s0 + $0x88] sm:$0xff]
    %v166 = vld [vmem:[%s0 + $0x90] sm:$0xff]
    %v167 = vld [vmem:[%s0 + $0x98] sm:$0xff]
    %v168 = vld [vmem:[%s0 + $0xa0] sm:$0xff]
    %v169 = vld [vmem:[%s0 + $0xa8] sm:$0xff]
    %v170 = vld [vmem:[%s0 + $0xb0] sm:$0xff]
    %v171 = vld [vmem:[%s0 + $0xb8] sm:$0xff]
    %v172 = vld [vmem:[%s0 + $0xc0] sm:$0xff]
    %v173 = vld [vmem:[%s0 + $0xc8] sm:$0xff]
    %v174 = vld [vmem:[%s0 + $0xd0] sm:$0xff]
    %v175 = vld [vmem:[%s0 + $0xd8] sm:$0xff]
    %v176 = vld [vmem:[%s0 + $0xe0] sm:$0xff]
    %v177 = vld [vmem:[%s0 + $0xe8] sm:$0xff]
    %v178 = vld [vmem:[%s0 + $0xf0] sm:$0xff]
    %v179 = vld [vmem:[%s0 + $0xf8] sm:$0xff]
    %180 = vmatprep.subr.mxu0 0.0
    %181 = vmatpush1.msra.mxu0 %v148
    %182 = vmatprep.subr.mxu0 0.0
    %183 = vmatpush1.msra.mxu0 %v149
    %184 = vmatprep.subr.mxu0 0.0
    %185 = vmatpush1.msra.mxu0 %v150
    %186 = vmatprep.subr.mxu0 0.0
    %187 = vmatpush1.msra.mxu0 %v151
    %188 = vmatprep.subr.mxu0 0.0
    %189 = vmatpush1.msra.mxu0 %v152
    %190 = vmatprep.subr.mxu0 0.0
    %191 = vmatpush1.msra.mxu0 %v153
    %192 = vmatprep.subr.mxu0 0.0
    %193 = vmatpush1.msra.mxu0 %v154
    %194 = vmatprep.subr.mxu0 0.0
    %195 = vmatpush1.msra.mxu0 %v155
    %196 = vmatprep.subr.mxu0 0.0
    %197 = vmatpush1.msra.mxu0 %v156
    %198 = vmatprep.subr.mxu0 0.0
    %199 = vmatpush1.msra.mxu0 %v157
    %200 = vmatprep.subr.mxu0 0.0
    %201 = vmatpush1.msra.mxu0 %v158
    %202 = vmatprep.subr.mxu0 0.0
    %203 = vmatpush1.msra.mxu0 %v159
    %204 = vmatprep.subr.mxu0 0.0
    %205 = vmatpush1.msra.mxu0 %v160
    %206 = vmatprep.subr.mxu0 0.0
    %207 = vmatpush1.msra.mxu0 %v161
    %208 = vmatprep.subr.mxu0 0.0
    %209 = vmatpush1.msra.mxu0 %v162
    %210 = vmatprep.subr.mxu0 0.0
    %211 = vmatpush1.msra.mxu0 %v163
    %212 = vmatprep.subr.mxu0 0.0
    %213 = vmatpush1.msra.mxu0 %v164
    %214 = vmatprep.subr.mxu0 0.0
    %215 = vmatpush1.msra.mxu0 %v165
    %216 = vmatprep.subr.mxu0 0.0
    %217 = vmatpush1.msra.mxu0 %v166
    %218 = vmatprep.subr.mxu0 0.0
    %219 = vmatpush1.msra.mxu0 %v167
    %220 = vmatprep.subr.mxu0 0.0
    %221 = vmatpush1.msra.mxu0 %v168
    %222 = vmatprep.subr.mxu0 0.0
    %223 = vmatpush1.msra.mxu0 %v169
    %224 = vmatprep.subr.mxu0 0.0
    %225 = vmatpush1.msra.mxu0 %v170
    %226 = vmatprep.subr.mxu0 0.0
    %227 = vmatpush1.msra.mxu0 %v171
    %228 = vmatprep.subr.mxu0 0.0
    %229 = vmatpush1.msra.mxu0 %v172
    %230 = vmatprep.subr.mxu0 0.0
    %231 = vmatpush1.msra.mxu0 %v173
    %232 = vmatprep.subr.mxu0 0.0
    %233 = vmatpush1.msra.mxu0 %v174
    %234 = vmatprep.subr.mxu0 0.0
    %235 = vmatpush1.msra.mxu0 %v175
    %236 = vmatprep.subr.mxu0 0.0
    %237 = vmatpush1.msra.mxu0 %v176
    %238 = vmatprep.subr.mxu0 0.0
    %239 = vmatpush1.msra.mxu0 %v177
    %240 = vmatprep.subr.mxu0 0.0
    %241 = vmatpush1.msra.mxu0 %v178
    %242 = vmatprep.subr.mxu0 0.0
    %243 = vmatpush1.msra.mxu0 %v179
    %244 = vmatprep.mubr.f32.mxu0 %v74
    %245 = vmatmul.mubr.f32.gmra.mrb[0].mxu0 %v73
    %v246 = vpop.f32.mrb[0].mxu0
    %v247 = vadd.f32 0.0, %v246
    %v248 = vpop.f32.mrb[0].mxu0
    %249 = vmatprep.mubr.f32.mxu0 %v76
    %250 = vmatmul.mubr.f32.gmra.mrb[0].mxu0 %v75
    %v251 = vpop.f32.mrb[0].mxu0
    %v252 = vadd.f32 0.0, %v251
    %v253 = vpop.f32.mrb[0].mxu0
    %254 = vmatprep.mubr.f32.mxu0 %v78
    %255 = vmatmul.mubr.f32.gmra.mrb[0].mxu0 %v77
    %v256 = vpop.f32.mrb[0].mxu0
    %v257 = vadd.f32 0.0, %v256
    %v258 = vpop.f32.mrb[0].mxu0
    %259 = vmatprep.mubr.f32.mxu0 %v80
    %260 = vmatmul.mubr.f32.gmra.mrb[0].mxu0 %v79
    %v261 = vpop.f32.mrb[0].mxu0
    %v262 = vadd.f32 0.0, %v261
    %v263 = vpop.f32.mrb[0].mxu0
    %264 = vmatprep.mubr.f32.mxu0 %v82
    %265 = vmatmul.mubr.f32.gmra.mrb[0].mxu0 %v81
    %v266 = vpop.f32.mrb[0].mxu0
    %v267 = vadd.f32 0.0, %v266
    %v268 = vpop.f32.mrb[0].mxu0
    %269 = vmatprep.mubr.f32.mxu0 %v84
    %270 = vmatmul.mubr.f32.gmra.mrb[0].mxu0 %v83
    %v271 = vpop.f32.mrb[0].mxu0
    %v272 = vadd.f32 0.0, %v271
    %v273 = vpop.f32.mrb[0].mxu0
    %274 = vmatprep.mubr.f32.mxu0 %v86
    %275 = vmatmul.mubr.f32.gmra.mrb[0].mxu0 %v85
    %v276 = vpop.f32.mrb[0].mxu0
    %v277 = vadd.f32 0.0, %v276
    %v278 = vpop.f32.mrb[0].mxu0
    %279 = vmatprep.mubr.f32.mxu0 %v88
    %280 = vmatmul.mubr.f32.gmra.mrb[0].mxu0 %v87
    %v281 = vpop.f32.mrb[0].mxu0
    %v282 = vadd.f32 0.0, %v281
    %v283 = vpop.f32.mrb[0].mxu0
    %284 = vmatprep.mubr.f32.mxu0 %v90
    %285 = vmatmul.mubr.f32.gmra.mrb[0].mxu0 %v89
    %v286 = vpop.f32.mrb[0].mxu0
    %v287 = vadd.f32 0.0, %v286
    %v288 = vpop.f32.mrb[0].mxu0
    %289 = vmatprep.mubr.f32.mxu0 %v92
    %290 = vmatmul.mubr.f32.gmra.mrb[0].mxu0 %v91
    %v291 = vpop.f32.mrb[0].mxu0
    %v292 = vadd.f32 0.0, %v291
    %v293 = vpop.f32.mrb[0].mxu0
    %294 = vmatprep.mubr.f32.mxu0 %v94
    %295 = vmatmul.mubr.f32.gmra.mrb[0].mxu0 %v93
    %v296 = vpop.f32.mrb[0].mxu0
    %v297 = vadd.f32 0.0, %v296
    %v298 = vpop.f32.mrb[0].mxu0
    %299 = vmatprep.mubr.f32.mxu0 %v96
    %300 = vmatmul.mubr.f32.gmra.mrb[0].mxu0 %v95
    %v301 = vpop.f32.mrb[0].mxu0
    %v302 = vadd.f32 0.0, %v301
    %v303 = vpop.f32.mrb[0].mxu0
    %304 = vmatprep.mubr.f32.mxu0 %v98
    %305 = vmatmul.mubr.f32.gmra.mrb[0].mxu0 %v97
    %v306 = vpop.f32.mrb[0].mxu0
    %v307 = vadd.f32 0.0, %v306
    %v308 = vpop.f32.mrb[0].mxu0
    %309 = vmatprep.mubr.f32.mxu0 %v100
    %310 = vmatmul.mubr.f32.gmra.mrb[0].mxu0 %v99
    %v311 = vpop.f32.mrb[0].mxu0
    %v312 = vadd.f32 0.0, %v311
    %v313 = vpop.f32.mrb[0].mxu0
    %314 = vmatprep.mubr.f32.mxu0 %v102
    %315 = vmatmul.mubr.f32.gmra.mrb[0].mxu0 %v101
    %v316 = vpop.f32.mrb[0].mxu0
    %v317 = vadd.f32 0.0, %v316
    %v318 = vpop.f32.mrb[0].mxu0
    %319 = vmatprep.mubr.f32.mxu0 %v104
    %320 = vmatmul.mubr.f32.gmra.mrb[0].mxu0 %v103
    %v321 = vpop.f32.mrb[0].mxu0
    %v322 = vadd.f32 0.0, %v321
    %v323 = vpop.f32.mrb[0].mxu0
    %324 = vmatprep.mubr.f32.mxu0 %v106
    %325 = vmatmul.mubr.f32.gmra.mrb[0].mxu0 %v105
    %v326 = vpop.f32.mrb[0].mxu0
    %v327 = vadd.f32 0.0, %v326
    %v328 = vpop.f32.mrb[0].mxu0
    %329 = vmatprep.mubr.f32.mxu0 %v108
    %330 = vmatmul.mubr.f32.gmra.mrb[0].mxu0 %v107
    %v331 = vpop.f32.mrb[0].mxu0
    %v332 = vadd.f32 0.0, %v331
    %v333 = vpop.f32.mrb[0].mxu0
    %334 = vmatprep.mubr.f32.mxu0 %v110
    %335 = vmatmul.mubr.f32.gmra.mrb[0].mxu0 %v109
    %v336 = vpop.f32.mrb[0].mxu0
    %v337 = vadd.f32 0.0, %v336
    %v338 = vpop.f32.mrb[0].mxu0
    %339 = vmatprep.mubr.f32.mxu0 %v112
    %340 = vmatmul.mubr.f32.gmra.mrb[0].mxu0 %v111
    %v341 = vpop.f32.mrb[0].mxu0
    %v342 = vadd.f32 0.0, %v341
    %v343 = vpop.f32.mrb[0].mxu0
    %344 = vmatprep.mubr.f32.mxu0 %v114
    %345 = vmatmul.mubr.f32.gmra.mrb[0].mxu0 %v113
    %v346 = vpop.f32.mrb[0].mxu0
    %v347 = vadd.f32 0.0, %v346
    %v348 = vpop.f32.mrb[0].mxu0
    %349 = vmatprep.mubr.f32.mxu0 %v116
    %350 = vmatmul.mubr.f32.gmra.mrb[0].mxu0 %v115
    %v351 = vpop.f32.mrb[0].mxu0
    %v352 = vadd.f32 0.0, %v351
    %v353 = vpop.f32.mrb[0].mxu0
    %354 = vmatprep.mubr.f32.mxu0 %v118
    %355 = vmatmul.mubr.f32.gmra.mrb[0].mxu0 %v117
    %v356 = vpop.f32.mrb[0].mxu0
    %v357 = vadd.f32 0.0, %v356
    %v358 = vpop.f32.mrb[0].mxu0
    %359 = vmatprep.mubr.f32.mxu0 %v120
    %360 = vmatmul.mubr.f32.gmra.mrb[0].mxu0 %v119
    %v361 = vpop.f32.mrb[0].mxu0
    %v362 = vadd.f32 0.0, %v361
    %v363 = vpop.f32.mrb[0].mxu0
    %364 = vmatprep.mubr.f32.mxu0 %v122
    %365 = vmatmul.mubr.f32.gmra.mrb[0].mxu0 %v121
    %v366 = vpop.f32.mrb[0].mxu0
    %v367 = vadd.f32 0.0, %v366
    %v368 = vpop.f32.mrb[0].mxu0
    %369 = vdwg.mxu0
    %v370 = vadd.f32 %v123, %v247
    %v371 = vadd.f32 %v124, %v252
    %v372 = vadd.f32 %v125, %v257
    %v373 = vadd.f32 %v126, %v262
    %v374 = vadd.f32 %v127, %v267
    %v375 = vadd.f32 %v128, %v272
    %v376 = vadd.f32 %v129, %v277
    %v377 = vadd.f32 %v130, %v282
    %v378 = vadd.f32 %v131, %v287
    %v379 = vadd.f32 %v132, %v292
    %v380 = vadd.f32 %v133, %v297
    %v381 = vadd.f32 %v134, %v302
    %v382 = vadd.f32 %v135, %v307
    %v383 = vadd.f32 %v136, %v312
    %v384 = vadd.f32 %v137, %v317
    %v385 = vadd.f32 %v138, %v322
    %v386 = vadd.f32 %v139, %v327
    %v387 = vadd.f32 %v140, %v332
    %v388 = vadd.f32 %v141, %v337
    %v389 = vadd.f32 %v142, %v342
    %v390 = vadd.f32 %v143, %v347
    %v391 = vadd.f32 %v144, %v352
    %v392 = vadd.f32 %v145, %v357
    %v393 = vadd.f32 %v146, %v362
    %v394 = vadd.f32 %v147, %v367
    %vm395 = vcmask 7168
    %396 = vst.msk [vmem:[#allocation2] sm:$0xff] %vm395, %v370
    %397 = vst.msk [vmem:[#allocation2 + $0x8] sm:$0xff] %vm395, %v371
    %398 = vst.msk [vmem:[#allocation2 + $0x10] sm:$0xff] %vm395, %v372
    %399 = vst.msk [vmem:[#allocation2 + $0x18] sm:$0xff] %vm395, %v373
    %400 = vst.msk [vmem:[#allocation2 + $0x20] sm:$0xff] %vm395, %v374
    %401 = vst.msk [vmem:[#allocation2 + $0x28] sm:$0xff] %vm395, %v375
    %402 = vst.msk [vmem:[#allocation2 + $0x30] sm:$0xff] %vm395, %v376
    %403 = vst.msk [vmem:[#allocation2 + $0x38] sm:$0xff] %vm395, %v377
    %404 = vst.msk [vmem:[#allocation2 + $0x40] sm:$0xff] %vm395, %v378
    %405 = vst.msk [vmem:[#allocation2 + $0x48] sm:$0xff] %vm395, %v379
    %406 = vst.msk [vmem:[#allocation2 + $0x50] sm:$0xff] %vm395, %v380
    %407 = vst.msk [vmem:[#allocation2 + $0x58] sm:$0xff] %vm395, %v381
    %408 = vst.msk [vmem:[#allocation2 + $0x60] sm:$0xff] %vm395, %v382
    %409 = vst.msk [vmem:[#allocation2 + $0x68] sm:$0xff] %vm395, %v383
    %410 = vst.msk [vmem:[#allocation2 + $0x70] sm:$0xff] %vm395, %v384
    %411 = vst.msk [vmem:[#allocation2 + $0x78] sm:$0xff] %vm395, %v385
    %412 = vst.msk [vmem:[#allocation2 + $0x80] sm:$0xff] %vm395, %v386
    %413 = vst.msk [vmem:[#allocation2 + $0x88] sm:$0xff] %vm395, %v387
    %414 = vst.msk [vmem:[#allocation2 + $0x90] sm:$0xff] %vm395, %v388
    %415 = vst.msk [vmem:[#allocation2 + $0x98] sm:$0xff] %vm395, %v389
    %416 = vst.msk [vmem:[#allocation2 + $0xa0] sm:$0xff] %vm395, %v390
    %417 = vst.msk [vmem:[#allocation2 + $0xa8] sm:$0xff] %vm395, %v391
    %418 = vst.msk [vmem:[#allocation2 + $0xb0] sm:$0xff] %vm395, %v392
    %419 = vst.msk [vmem:[#allocation2 + $0xb8] sm:$0xff] %vm395, %v393
    %420 = vst.msk [vmem:[#allocation2 + $0xc0] sm:$0xff] %vm395, %v394
    // Predicated region
    $region22: #{tpu_custom_call.1} parent=1 // pred_check
      %p421 = pneg %p18
    $region23: #{tpu_custom_call.1} parent=1 // pred_check_branch
      %423 = sbr.rel (%p421) target = $region25
    $region24: #{tpu_custom_call.1} parent=1 // pred_region
      %v424 = vld [vmem:[#allocation2] sm:$0xff]
      %v425 = vld [vmem:[#allocation2 + $0x8] sm:$0xff]
      %v426 = vld [vmem:[#allocation2 + $0x10] sm:$0xff]
      %v427 = vld [vmem:[#allocation2 + $0x18] sm:$0xff]
      %v428 = vld [vmem:[#allocation2 + $0x20] sm:$0xff]
      %v429 = vld [vmem:[#allocation2 + $0x28] sm:$0xff]
      %v430 = vld [vmem:[#allocation2 + $0x30] sm:$0xff]
      %v431 = vld [vmem:[#allocation2 + $0x38] sm:$0xff]
      %v432 = vld [vmem:[#allocation2 + $0x40] sm:$0xff]
      %v433 = vld [vmem:[#allocation2 + $0x48] sm:$0xff]
      %v434 = vld [vmem:[#allocation2 + $0x50] sm:$0xff]
      %v435 = vld [vmem:[#allocation2 + $0x58] sm:$0xff]
      %v436 = vld [vmem:[#allocation2 + $0x60] sm:$0xff]
      %v437 = vld [vmem:[#allocation2 + $0x68] sm:$0xff]
      %v438 = vld [vmem:[#allocation2 + $0x70] sm:$0xff]
      %v439 = vld [vmem:[#allocation2 + $0x78] sm:$0xff]
      %v440 = vld [vmem:[#allocation2 + $0x80] sm:$0xff]
      %v441 = vld [vmem:[#allocation2 + $0x88] sm:$0xff]
      %v442 = vld [vmem:[#allocation2 + $0x90] sm:$0xff]
      %v443 = vld [vmem:[#allocation2 + $0x98] sm:$0xff]
      %v444 = vld [vmem:[#allocation2 + $0xa0] sm:$0xff]
      %v445 = vld [vmem:[#allocation2 + $0xa8] sm:$0xff]
      %v446 = vld [vmem:[#allocation2 + $0xb0] sm:$0xff]
      %v447 = vld [vmem:[#allocation2 + $0xb8] sm:$0xff]
      %v448 = vld [vmem:[#allocation2 + $0xc0] sm:$0xff]
      %v449 = vld [vmem:[%s3] sm:$0xff]
      %v450 = vld [vmem:[%s3 + $0x8] sm:$0xff]
      %v451 = vld [vmem:[%s3 + $0x10] sm:$0xff]
      %v452 = vld [vmem:[%s3 + $0x18] sm:$0xff]
      %v453 = vld [vmem:[%s3 + $0x20] sm:$0xff]
      %v454 = vld [vmem:[%s3 + $0x28] sm:$0xff]
      %v455 = vld [vmem:[%s3 + $0x30] sm:$0xff]
      %v456 = vld [vmem:[%s3 + $0x38] sm:$0xff]
      %v457 = vld [vmem:[%s3 + $0x40] sm:$0xff]
      %v458 = vld [vmem:[%s3 + $0x48] sm:$0xff]
      %v459 = vld [vmem:[%s3 + $0x50] sm:$0xff]
      %v460 = vld [vmem:[%s3 + $0x58] sm:$0xff]
      %v461 = vld [vmem:[%s3 + $0x60] sm:$0xff]
      %v462 = vld [vmem:[%s3 + $0x68] sm:$0xff]
      %v463 = vld [vmem:[%s3 + $0x70] sm:$0xff]
      %v464 = vld [vmem:[%s3 + $0x78] sm:$0xff]
      %v465 = vld [vmem:[%s3 + $0x80] sm:$0xff]
      %v466 = vld [vmem:[%s3 + $0x88] sm:$0xff]
      %v467 = vld [vmem:[%s3 + $0x90] sm:$0xff]
      %v468 = vld [vmem:[%s3 + $0x98] sm:$0xff]
      %v469 = vld [vmem:[%s3 + $0xa0] sm:$0xff]
      %v470 = vld [vmem:[%s3 + $0xa8] sm:$0xff]
      %v471 = vld [vmem:[%s3 + $0xb0] sm:$0xff]
      %v472 = vld [vmem:[%s3 + $0xb8] sm:$0xff]
      %v473 = vld [vmem:[%s3 + $0xc0] sm:$0xff]
      %v474 = vsub.f32 1.0, %v449
      %v475 = vsub.f32 1.0, %v450
      %v476 = vsub.f32 1.0, %v451
      %v477 = vsub.f32 1.0, %v452
      %v478 = vsub.f32 1.0, %v453
      %v479 = vsub.f32 1.0, %v454
      %v480 = vsub.f32 1.0, %v455
      %v481 = vsub.f32 1.0, %v456
      %v482 = vsub.f32 1.0, %v457
      %v483 = vsub.f32 1.0, %v458
      %v484 = vsub.f32 1.0, %v459
      %v485 = vsub.f32 1.0, %v460
      %v486 = vsub.f32 1.0, %v461
      %v487 = vsub.f32 1.0, %v462
      %v488 = vsub.f32 1.0, %v463
      %v489 = vsub.f32 1.0, %v464
      %v490 = vsub.f32 1.0, %v465
      %v491 = vsub.f32 1.0, %v466
      %v492 = vsub.f32 1.0, %v467
      %v493 = vsub.f32 1.0, %v468
      %v494 = vsub.f32 1.0, %v469
      %v495 = vsub.f32 1.0, %v470
      %v496 = vsub.f32 1.0, %v471
      %v497 = vsub.f32 1.0, %v472
      %v498 = vsub.f32 1.0, %v473
      %vm499 = vcmp.gt.f32.partialorder %v424, 0.0
      %vm500 = vcmp.gt.f32.partialorder %v425, 0.0
      %vm501 = vcmp.gt.f32.partialorder %v426, 0.0
      %vm502 = vcmp.gt.f32.partialorder %v427, 0.0
      %vm503 = vcmp.gt.f32.partialorder %v428, 0.0
      %vm504 = vcmp.gt.f32.partialorder %v429, 0.0
      %vm505 = vcmp.gt.f32.partialorder %v430, 0.0
      %vm506 = vcmp.gt.f32.partialorder %v431, 0.0
      %vm507 = vcmp.gt.f32.partialorder %v432, 0.0
      %vm508 = vcmp.gt.f32.partialorder %v433, 0.0
      %vm509 = vcmp.gt.f32.partialorder %v434, 0.0
      %vm510 = vcmp.gt.f32.partialorder %v435, 0.0
      %vm511 = vcmp.gt.f32.partialorder %v436, 0.0
      %vm512 = vcmp.gt.f32.partialorder %v437, 0.0
      %vm513 = vcmp.gt.f32.partialorder %v438, 0.0
      %vm514 = vcmp.gt.f32.partialorder %v439, 0.0
      %vm515 = vcmp.gt.f32.partialorder %v440, 0.0
      %vm516 = vcmp.gt.f32.partialorder %v441, 0.0
      %vm517 = vcmp.gt.f32.partialorder %v442, 0.0
      %vm518 = vcmp.gt.f32.partialorder %v443, 0.0
      %vm519 = vcmp.gt.f32.partialorder %v444, 0.0
      %vm520 = vcmp.gt.f32.partialorder %v445, 0.0
      %vm521 = vcmp.gt.f32.partialorder %v446, 0.0
      %vm522 = vcmp.gt.f32.partialorder %v447, 0.0
      %vm523 = vcmp.gt.f32.partialorder %v448, 0.0
      %v524 = vsel %vm499, %v424, 1.0
      %v525 = vsel %vm500, %v425, 1.0
      %v526 = vsel %vm501, %v426, 1.0
      %v527 = vsel %vm502, %v427, 1.0
      %v528 = vsel %vm503, %v428, 1.0
      %v529 = vsel %vm504, %v429, 1.0
      %v530 = vsel %vm505, %v430, 1.0
      %v531 = vsel %vm506, %v431, 1.0
      %v532 = vsel %vm507, %v432, 1.0
      %v533 = vsel %vm508, %v433, 1.0
      %v534 = vsel %vm509, %v434, 1.0
      %v535 = vsel %vm510, %v435, 1.0
      %v536 = vsel %vm511, %v436, 1.0
      %v537 = vsel %vm512, %v437, 1.0
      %v538 = vsel %vm513, %v438, 1.0
      %v539 = vsel %vm514, %v439, 1.0
      %v540 = vsel %vm515, %v440, 1.0
      %v541 = vsel %vm516, %v441, 1.0
      %v542 = vsel %vm517, %v442, 1.0
      %v543 = vsel %vm518, %v443, 1.0
      %v544 = vsel %vm519, %v444, 1.0
      %v545 = vsel %vm520, %v445, 1.0
      %v546 = vsel %vm521, %v446, 1.0
      %v547 = vsel %vm522, %v447, 1.0
      %v548 = vsel %vm523, %v448, 1.0
      %v549 = vlog2.pop %v524
      %v550 = vmul.f32 %v549, 0.6931472
      %v551 = vlog2.pop %v525
      %v552 = vmul.f32 %v551, 0.6931472
      %v553 = vlog2.pop %v526
      %v554 = vmul.f32 %v553, 0.6931472
      %v555 = vlog2.pop %v527
      %v556 = vmul.f32 %v555, 0.6931472
      %v557 = vlog2.pop %v528
      %v558 = vmul.f32 %v557, 0.6931472
      %v559 = vlog2.pop %v529
      %v560 = vmul.f32 %v559, 0.6931472
      %v561 = vlog2.pop %v530
      %v562 = vmul.f32 %v561, 0.6931472
      %v563 = vlog2.pop %v531
      %v564 = vmul.f32 %v563, 0.6931472
      %v565 = vlog2.pop %v532
      %v566 = vmul.f32 %v565, 0.6931472
      %v567 = vlog2.pop %v533
      %v568 = vmul.f32 %v567, 0.6931472
      %v569 = vlog2.pop %v534
      %v570 = vmul.f32 %v569, 0.6931472
      %v571 = vlog2.pop %v535
      %v572 = vmul.f32 %v571, 0.6931472
      %v573 = vlog2.pop %v536
      %v574 = vmul.f32 %v573, 0.6931472
      %v575 = vlog2.pop %v537
      %v576 = vmul.f32 %v575, 0.6931472
      %v577 = vlog2.pop %v538
      %v578 = vmul.f32 %v577, 0.6931472
      %v579 = vlog2.pop %v539
      %v580 = vmul.f32 %v579, 0.6931472
      %v581 = vlog2.pop %v540
      %v582 = vmul.f32 %v581, 0.6931472
      %v583 = vlog2.pop %v541
      %v584 = vmul.f32 %v583, 0.6931472
      %v585 = vlog2.pop %v542
      %v586 = vmul.f32 %v585, 0.6931472
      %v587 = vlog2.pop %v543
      %v588 = vmul.f32 %v587, 0.6931472
      %v589 = vlog2.pop %v544
      %v590 = vmul.f32 %v589, 0.6931472
      %v591 = vlog2.pop %v545
      %v592 = vmul.f32 %v591, 0.6931472
      %v593 = vlog2.pop %v546
      %v594 = vmul.f32 %v593, 0.6931472
      %v595 = vlog2.pop %v547
      %v596 = vmul.f32 %v595, 0.6931472
      %v597 = vlog2.pop %v548
      %v598 = vmul.f32 %v597, 0.6931472
      %v599 = vld [vmem:[%s2] sm:$0xff]
      %v600 = vld [vmem:[%s2 + $0x8] sm:$0xff]
      %v601 = vld [vmem:[%s2 + $0x10] sm:$0xff]
      %v602 = vld [vmem:[%s2 + $0x18] sm:$0xff]
      %v603 = vld [vmem:[%s2 + $0x20] sm:$0xff]
      %v604 = vld [vmem:[%s2 + $0x28] sm:$0xff]
      %v605 = vld [vmem:[%s2 + $0x30] sm:$0xff]
      %v606 = vld [vmem:[%s2 + $0x38] sm:$0xff]
      %v607 = vld [vmem:[%s2 + $0x40] sm:$0xff]
      %v608 = vld [vmem:[%s2 + $0x48] sm:$0xff]
      %v609 = vld [vmem:[%s2 + $0x50] sm:$0xff]
      %v610 = vld [vmem:[%s2 + $0x58] sm:$0xff]
      %v611 = vld [vmem:[%s2 + $0x60] sm:$0xff]
      %v612 = vld [vmem:[%s2 + $0x68] sm:$0xff]
      %v613 = vld [vmem:[%s2 + $0x70] sm:$0xff]
      %v614 = vld [vmem:[%s2 + $0x78] sm:$0xff]
      %v615 = vld [vmem:[%s2 + $0x80] sm:$0xff]
      %v616 = vld [vmem:[%s2 + $0x88] sm:$0xff]
      %v617 = vld [vmem:[%s2 + $0x90] sm:$0xff]
      %v618 = vld [vmem:[%s2 + $0x98] sm:$0xff]
      %v619 = vld [vmem:[%s2 + $0xa0] sm:$0xff]
      %v620 = vld [vmem:[%s2 + $0xa8] sm:$0xff]
      %v621 = vld [vmem:[%s2 + $0xb0] sm:$0xff]
      %v622 = vld [vmem:[%s2 + $0xb8] sm:$0xff]
      %v623 = vld [vmem:[%s2 + $0xc0] sm:$0xff]
      %v624 = vsub.f32 %v599, %v550
      %v625 = vsub.f32 %v600, %v552
      %v626 = vsub.f32 %v601, %v554
      %v627 = vsub.f32 %v602, %v556
      %v628 = vsub.f32 %v603, %v558
      %v629 = vsub.f32 %v604, %v560
      %v630 = vsub.f32 %v605, %v562
      %v631 = vsub.f32 %v606, %v564
      %v632 = vsub.f32 %v607, %v566
      %v633 = vsub.f32 %v608, %v568
      %v634 = vsub.f32 %v609, %v570
      %v635 = vsub.f32 %v610, %v572
      %v636 = vsub.f32 %v611, %v574
      %v637 = vsub.f32 %v612, %v576
      %v638 = vsub.f32 %v613, %v578
      %v639 = vsub.f32 %v614, %v580
      %v640 = vsub.f32 %v615, %v582
      %v641 = vsub.f32 %v616, %v584
      %v642 = vsub.f32 %v617, %v586
      %v643 = vsub.f32 %v618, %v588
      %v644 = vsub.f32 %v619, %v590
      %v645 = vsub.f32 %v620, %v592
      %v646 = vsub.f32 %v621, %v594
      %v647 = vsub.f32 %v622, %v596
      %v648 = vsub.f32 %v623, %v598
      %v649 = vmul.f32 %v474, %v624
      %v650 = vmul.f32 %v475, %v625
      %v651 = vmul.f32 %v476, %v626
      %v652 = vmul.f32 %v477, %v627
      %v653 = vmul.f32 %v478, %v628
      %v654 = vmul.f32 %v479, %v629
      %v655 = vmul.f32 %v480, %v630
      %v656 = vmul.f32 %v481, %v631
      %v657 = vmul.f32 %v482, %v632
      %v658 = vmul.f32 %v483, %v633
      %v659 = vmul.f32 %v484, %v634
      %v660 = vmul.f32 %v485, %v635
      %v661 = vmul.f32 %v486, %v636
      %v662 = vmul.f32 %v487, %v637
      %v663 = vmul.f32 %v488, %v638
      %v664 = vmul.f32 %v489, %v639
      %v665 = vmul.f32 %v490, %v640
      %v666 = vmul.f32 %v491, %v641
      %v667 = vmul.f32 %v492, %v642
      %v668 = vmul.f32 %v493, %v643
      %v669 = vmul.f32 %v494, %v644
      %v670 = vmul.f32 %v495, %v645
      %v671 = vmul.f32 %v496, %v646
      %v672 = vmul.f32 %v497, %v647
      %v673 = vmul.f32 %v498, %v648
      %v674 = vsel %vm395, %v649, 0.0
      %v675 = vsel %vm395, %v650, 0.0
      %v676 = vadd.f32 %v674, %v675
      %v677 = vsel %vm395, %v651, 0.0
      %v678 = vadd.f32 %v676, %v677
      %v679 = vsel %vm395, %v652, 0.0
      %v680 = vadd.f32 %v678, %v679
      %v681 = vsel %vm395, %v653, 0.0
      %v682 = vadd.f32 %v680, %v681
      %v683 = vsel %vm395, %v654, 0.0
      %v684 = vadd.f32 %v682, %v683
      %v685 = vsel %vm395, %v655, 0.0
      %v686 = vadd.f32 %v684, %v685
      %v687 = vsel %vm395, %v656, 0.0
      %v688 = vadd.f32 %v686, %v687
      %v689 = vsel %vm395, %v657, 0.0
      %v690 = vadd.f32 %v688, %v689
      %v691 = vsel %vm395, %v658, 0.0
      %v692 = vadd.f32 %v690, %v691
      %v693 = vsel %vm395, %v659, 0.0
      %v694 = vadd.f32 %v692, %v693
      %v695 = vsel %vm395, %v660, 0.0
      %v696 = vadd.f32 %v694, %v695
      %v697 = vsel %vm395, %v661, 0.0
      %v698 = vadd.f32 %v696, %v697
      %v699 = vsel %vm395, %v662, 0.0
      %v700 = vadd.f32 %v698, %v699
      %v701 = vsel %vm395, %v663, 0.0
      %v702 = vadd.f32 %v700, %v701
      %v703 = vsel %vm395, %v664, 0.0
      %v704 = vadd.f32 %v702, %v703
      %v705 = vsel %vm395, %v665, 0.0
      %v706 = vadd.f32 %v704, %v705
      %v707 = vsel %vm395, %v666, 0.0
      %v708 = vadd.f32 %v706, %v707
      %v709 = vsel %vm395, %v667, 0.0
      %v710 = vadd.f32 %v708, %v709
      %v711 = vsel %vm395, %v668, 0.0
      %v712 = vadd.f32 %v710, %v711
      %v713 = vsel %vm395, %v669, 0.0
      %v714 = vadd.f32 %v712, %v713
      %v715 = vsel %vm395, %v670, 0.0
      %v716 = vadd.f32 %v714, %v715
      %v717 = vsel %vm395, %v671, 0.0
      %v718 = vadd.f32 %v716, %v717
      %v719 = vsel %vm395, %v672, 0.0
      %v720 = vadd.f32 %v718, %v719
      %v721 = vsel %vm395, %v673, 0.0
      %v722 = vadd.f32 %v720, %v721
      %723 = vadd.xlane.f32.xlu0 %v722
      %v724 = vpop.xlane.xlu0 %723
      %v725 = vrot.slane %v724, 4
      %v726 = vadd.f32 %v724, %v725
      %v727 = vrot.slane %v726, 2
      %v728 = vadd.f32 %v726, %v727
      %v729 = vrot.slane %v728, 1
      %v730 = vadd.f32 %v728, %v729
      %s731 = vtos %v730
      %v732 = vstv %s731
      %733 = vst [vmem:[#allocation3] sm:$0xff] %v732
    $region25: #{tpu_custom_call.1} parent=1 // pred_fallthru
      _
    // Predicated region
    $region26: #{tpu_custom_call.1} parent=1 // pred_check
      _
    $region27: #{tpu_custom_call.1} parent=1 // pred_check_branch
      %735 = sbr.rel (0) target = $region29
    $region28: #{tpu_custom_call.1} parent=1 // pred_region
      %s737 = ssub.s32 128, 128
      %738 = vsyncadd [#allocation4], %s737
      %s740 = sshll.u32 [#allocation3], 4
      %s741 = int_to_ptr.vmem [resolvable:$true] %s740
      %743 = dma.vmem_to_hbm [thread:$0]  %s741, 128, %s4, [#allocation4]
    $region29: #{tpu_custom_call.1} parent=1 // pred_fallthru
      _
    // Predicated region
    $region30: #{tpu_custom_call.1} parent=1 // pred_check
      _
    $region31: #{tpu_custom_call.1} parent=1 // pred_check_branch
      %745 = sbr.rel (0) target = $region33
    $region32: #{tpu_custom_call.1} parent=1 // pred_region
      %746 = dma.done [#allocation4], 128
    $region33: #{tpu_custom_call.1} parent=1 // pred_fallthru
      _
    %747 = vsyncpa [#allocation4], 1

</llo_original>
